<compile_context>
chip_gen: v7x
topology: tpu7x:2x2x1
jax: 0.10.0
libtpu: 0.0.40
codegen_flags: <defaults>
</compile_context>

<pallas_src>
import functools

import jax
import jax.numpy as jnp
from jax import lax
from jax.experimental import pallas as pl
from jax.experimental.pallas import tpu as pltpu


def _round_up(x: int, m: int) -> int:
    return (x + m - 1) // m * m


def _patch_embed_kernel(patches_ref, weight_ref, bias_ref, out_ref):
    # patches_ref: (TM, Kp) bf16   weight_ref: (Kp, TN) bf16 (resident)
    # bias_ref:    (1, TN) f32     out_ref:    (TM, TN) out_dtype
    acc = jnp.dot(patches_ref[...], weight_ref[...],
                  preferred_element_type=jnp.float32)
    out_ref[...] = (acc + bias_ref[...]).astype(out_ref.dtype)


def _patch_embed_one(x, weight, bias, patch_size: int, flatten: bool,
                     mxu_dtype, out_dtype):
    B, C, H, W = x.shape
    D = weight.shape[0]
    P = patch_size
    gh, gw = H // P, W // P
    num_patches = gh * gw
    K = C * P * P
    M = B * num_patches
    N = D
    out_dtype = x.dtype if out_dtype is None else out_dtype

    # ---------------- tile selection ----------------
    # Whole-K reduction in one dot; N tile divides padded N exactly.
    Kp = _round_up(K, 128)
    Np = _round_up(N, 128)
    TN_CAP = 1024
    if Np <= TN_CAP:
        TN = Np
    else:
        TN = 512
        Np = _round_up(Np, TN)
    n_n = Np // TN

    TM_CAP = 1024
    n_m = pl.cdiv(M, TM_CAP)
    TM = _round_up(pl.cdiv(M, n_m), 16)      # bf16 sublane packing: x16
    Mp = TM * n_m

    # ---------------- host-side prep ----------------
    # im2col in (c, kh, kw) column order; cast to bf16 first so the whole
    # reshape/transpose/pad chain fuses into one XLA copy writing a bf16
    # patches buffer (half the HBM bytes of an f32 intermediate).
    # TODO(synk): fuse the im2col fully into the kernel (full-(H,W) x
    # BlockSpec + in-VMEM rearrange) to avoid materializing patches in HBM.
    xb = x.astype(mxu_dtype)
    xp = xb.reshape(B, C, gh, P, gw, P)
    xp = jnp.transpose(xp, (0, 2, 4, 1, 3, 5))       # (B, gh, gw, C, P, P)
    patches = xp.reshape(M, K)
    patches_p = jnp.pad(patches, ((0, Mp - M), (0, Kp - K)))

    w_mat = weight.reshape(D, K).T.astype(mxu_dtype)         # (K, D)
    w_p = jnp.pad(w_mat, ((0, Kp - K), (0, Np - N)))          # (Kp, Np)
    b_p = jnp.pad(bias.astype(jnp.float32), (0, Np - N)).reshape(1, Np)

    esz = lambda dt: jnp.dtype(dt).itemsize

    # Double-buffered tiles (Pallas allocates 2 buffers per spec even when the
    # block index never changes). Clamp under v7x's 64 MiB physical VMEM.
    vmem_bytes = 2 * (TM * Kp * esz(mxu_dtype)
                      + Kp * TN * esz(mxu_dtype)
                      + TM * TN * esz(out_dtype)
                      + TN * 4)
    vmem_limit = int(min(56 * 1024 * 1024,
                         max(8 * 1024 * 1024, int(1.5 * vmem_bytes))))

    cost = pl.CostEstimate(
        flops=2 * Mp * Kp * Np,
        transcendentals=0,
        bytes_accessed=(patches_p.size * esz(mxu_dtype)
                        + w_p.size * esz(mxu_dtype)       # weight fetched once
                        + b_p.size * 4
                        + Mp * Np * esz(out_dtype)))

    # Grid: (N tiles, M tiles) with M innermost so the weight/bias block index
    # is constant across the M sweep (Pallas skips the redundant re-DMA).
    grid = (n_n, n_m)

    out = pl.pallas_call(
        _patch_embed_kernel,
        out_shape=jax.ShapeDtypeStruct((Mp, Np), out_dtype),
        grid_spec=pltpu.PrefetchScalarGridSpec(
            num_scalar_prefetch=0,
            grid=grid,
            in_specs=[
                pl.BlockSpec((TM, Kp), lambda j, i: (i, 0)),
                pl.BlockSpec((Kp, TN), lambda j, i: (0, j)),
                pl.BlockSpec((1, TN), lambda j, i: (0, j)),
            ],
            out_specs=pl.BlockSpec((TM, TN), lambda j, i: (i, j)),
        ),
        compiler_params=pltpu.CompilerParams(
            dimension_semantics=("parallel", "parallel"),
            vmem_limit_bytes=vmem_limit),
        cost_estimate=cost,
    )(patches_p, w_p, b_p)

    if (Mp, Np) != (M, N):
        out = out[:M, :N]
    if flatten:
        # '... c h w -> ... (h w) c': rows are already ordered (b, gh, gw).
        return out.reshape(B, num_patches, D)
    # Un-flattened Conv2d output (B, D, gh, gw).
    return jnp.transpose(out.reshape(B, gh, gw, D), (0, 3, 1, 2))


def patch_embed(x, weight, bias, patch_size: int, flatten: bool = True,
                mxu_dtype=jnp.bfloat16, out_dtype=None):
    """PatchEmbed forward.

    x: (B, C, H, W) NCHW (or a list of such tensors, as in the module);
    weight: (D, C, P, P); bias: (D,).
    Returns (B, gh*gw, D) if flatten else (B, D, gh, gw).
    """
    if isinstance(x, (list, tuple)):
        return [_patch_embed_one(xi, weight, bias, patch_size, flatten,
                                 mxu_dtype, out_dtype) for xi in x]
    return _patch_embed_one(x, weight, bias, patch_size, flatten,
                            mxu_dtype, out_dtype)


if __name__ == "__main__":
    # Small config: resolution=16, patch_size=4, embed_dim=32, in_channels=4.
    resolution, patch_size, embed_dim, in_channels = 16, 4, 32, 4
    batch = 2

    key = jax.random.PRNGKey(0)
    kx, kw, kb = jax.random.split(key, 3)

    x = jax.random.normal(kx, (batch, in_channels, resolution, resolution),
                          dtype=jnp.float32)
    fan_in = in_channels * patch_size * patch_size
    bound = 1.0 / (fan_in ** 0.5)
    weight = jax.random.uniform(kw, (embed_dim, in_channels, patch_size, patch_size),
                                minval=-bound, maxval=bound, dtype=jnp.float32)
    bias = jax.random.uniform(kb, (embed_dim,), minval=-bound, maxval=bound,
                              dtype=jnp.float32)

    fn = jax.jit(functools.partial(patch_embed, patch_size=patch_size, flatten=True))
    out = fn(x, weight, bias)
    out = jax.block_until_ready(out)

    gh = resolution // patch_size
    assert out.shape == (batch, gh * gh, embed_dim), out.shape

    # Reference 1: mixed-precision GEMM matching the kernel's bf16-MXU /
    # f32-accumulate numerics (tight tolerance).
    xp = x.reshape(batch, in_channels, gh, patch_size, gh, patch_size)
    xp = jnp.transpose(xp, (0, 2, 4, 1, 3, 5))
    patches = xp.reshape(batch * gh * gh, in_channels * patch_size * patch_size)
    w_mat = weight.reshape(embed_dim, -1).T
    ref_mixed = (patches.astype(jnp.bfloat16).astype(jnp.float32)
                 @ w_mat.astype(jnp.bfloat16).astype(jnp.float32)) + bias[None, :]
    ref_mixed = ref_mixed.reshape(batch, gh * gh, embed_dim)
    assert jnp.allclose(out, ref_mixed, atol=1e-4, rtol=1e-4), \
        float(jnp.max(jnp.abs(out - ref_mixed)))

    # Reference 2: full-f32 Conv2d (module semantics), loose mixed-precision
    # tolerance for the bf16 MXU operands.
    ref = lax.conv_general_dilated(
        x, weight, window_strides=(patch_size, patch_size), padding="VALID",
        dimension_numbers=("NCHW", "OIHW", "NCHW"))
    ref = ref + bias[None, :, None, None]
    ref = jnp.transpose(ref.reshape(batch, embed_dim, gh * gh), (0, 2, 1))
    assert jnp.allclose(out, ref, atol=5e-2, rtol=5e-2), \
        float(jnp.max(jnp.abs(out - ref)))

    # Un-flattened path (B, D, gh, gw).
    out_nf = jax.block_until_ready(
        jax.jit(functools.partial(patch_embed, patch_size=patch_size,
                                  flatten=False))(x, weight, bias))
    assert out_nf.shape == (batch, embed_dim, gh, gh), out_nf.shape

    print("KERNEL_OK")
</pallas_src>

<mosaic_0001>
module attributes {stable_mosaic.version = 11 : i64} {
  func.func @_patch_embed_kernel(%arg0: i32, %arg1: i32, %arg2: memref<32x128xbf16, #tpu.memory_space<vmem>>, %arg3: memref<128x128xbf16, #tpu.memory_space<vmem>>, %arg4: memref<1x128xf32, #tpu.memory_space<vmem>>, %arg5: memref<32x128xf32, #tpu.memory_space<vmem>>) attributes {dimension_semantics = [#tpu.dimension_semantics<parallel>, #tpu.dimension_semantics<parallel>], iteration_bounds = array<i64: 1, 1>, scalar_prefetch = 0 : i64, scratch_operands = 0 : i64, tpu.core_type = #tpu.core_type<tc>, window_params = [{transform_indices = @transform_0, window_bounds = array<i64: 32, 128>}, {transform_indices = @transform_1, window_bounds = array<i64: 128, 128>}, {transform_indices = @transform_2, window_bounds = array<i64: 1, 128>}, {transform_indices = @transform_3, window_bounds = array<i64: 32, 128>}]} {
    %c0 = arith.constant 0 : index
    %c0_0 = arith.constant 0 : index
    %0 = vector.load %arg2[%c0, %c0_0] : memref<32x128xbf16, #tpu.memory_space<vmem>>, vector<32x128xbf16>
    %c0_1 = arith.constant 0 : index
    %c0_2 = arith.constant 0 : index
    %1 = vector.load %arg3[%c0_1, %c0_2] : memref<128x128xbf16, #tpu.memory_space<vmem>>, vector<128x128xbf16>
    %cst = arith.constant dense<0.000000e+00> : vector<32x128xf32>
    %2 = tpu.matmul %0, %1, %cst {dimension_numbers = #tpu.dot_dimension_numbers<[1], [0], [0], [1], [0, 0, 1, 1], [], []>} : vector<32x128xbf16>, vector<128x128xbf16>, vector<32x128xf32> -> vector<32x128xf32>
    %c0_3 = arith.constant 0 : index
    %c0_4 = arith.constant 0 : index
    %3 = vector.load %arg4[%c0_3, %c0_4] : memref<1x128xf32, #tpu.memory_space<vmem>>, vector<1x128xf32>
    %4 = vector.broadcast %3 : vector<1x128xf32> to vector<32x128xf32>
    %5 = arith.addf %2, %4 : vector<32x128xf32>
    %c0_5 = arith.constant 0 : index
    %c0_6 = arith.constant 0 : index
    %6 = vector.load %arg5[%c0_5, %c0_6] : memref<32x128xf32, #tpu.memory_space<vmem>>, vector<32x128xf32>
    tpu.vector_store %arg5[%c0_5, %c0_6], %5 {strides = array<i32>} : memref<32x128xf32, #tpu.memory_space<vmem>>, vector<32x128xf32>,
    return
  }
  func.func @transform_0(%arg0: i32, %arg1: i32) -> (i32, i32) {
    %c0_i32 = arith.constant 0 : i32
    %c0_i32_0 = arith.constant 0 : i32
    return %arg1, %c0_i32 : i32, i32
  }
  func.func @transform_1(%arg0: i32, %arg1: i32) -> (i32, i32) {
    %c0_i32 = arith.constant 0 : i32
    %c0_i32_0 = arith.constant 0 : i32
    return %c0_i32, %arg0 : i32, i32
  }
  func.func @transform_2(%arg0: i32, %arg1: i32) -> (i32, i32) {
    %c0_i32 = arith.constant 0 : i32
    %c0_i32_0 = arith.constant 0 : i32
    return %c0_i32, %arg0 : i32, i32
  }
  func.func @transform_3(%arg0: i32, %arg1: i32) -> (i32, i32) {
    %c0_i32 = arith.constant 0 : i32
    return %arg1, %arg0 : i32, i32
  }
}

</mosaic_0001>

<llo_original>
// kernel: patch_embed.1
$region0: #{patch_embed.1}
  #allocation0 [shape = 'u32[]', space=smem, size = 0x4, offset = 0x4, fixed_abs, tag = 'smem constant byte address 0x4 - core index']
  #allocation1 [shape = 'u32[144,128]{1,0:T(1,128)}', space=vmem, size = 0x12000, scoped, tag = 'internal scratch']
  %s0 = inlined_call_operand.vmem [shape: bf16[32,128], index: 0, kind: input, shape index: {}]
  %s1 = inlined_call_operand.vmem [shape: bf16[128,128], index: 1, kind: input, shape index: {}]
  %s2 = inlined_call_operand.vmem [shape: f32[1,128], index: 2, kind: input, shape index: {}]
  %s3 = inlined_call_operand.hbm [shape: f32[32,128], index: 3, kind: output, shape index: {}]
  %s4 = sld [smem:[#allocation0]]
  $region22: #{patch_embed.1} parent=0
    _
  %s6 = ssub.s32 1, %s4
  %s7 = scalar_select 0, %s6, %s4
  $region1: #{patch_embed.1} parent=0
    #allocation2 [shape = 'u8[16384]{0}', space=vmem, size = 0x4000, scoped, tag = 'output window, operand 0, single buffered']
    #allocation3 [shape = 's32[1]{0}', space=sflag, size = 0x4, scoped, tag = 'scoped memory for patch_embed.1']
    %8 = vsyncpa [#allocation3], 0
    // Predicated region
    $region2: #{patch_embed.1} parent=1 // pred_check
      _
    $region3: #{patch_embed.1} parent=1 // pred_check_branch
      %10 = sbr.rel (0) target = $region5
    $region4: #{patch_embed.1} parent=1 // pred_region
      _
    $region5: #{patch_embed.1} parent=1 // pred_fallthru
      _
    // Predicated region
    $region6: #{patch_embed.1} parent=1 // pred_check
      _
    $region7: #{patch_embed.1} parent=1 // pred_check_branch
      %12 = sbr.rel (0) target = $region9
    $region8: #{patch_embed.1} parent=1 // pred_region
      _
    $region9: #{patch_embed.1} parent=1 // pred_fallthru
      _
    // Predicated region
    $region10: #{patch_embed.1} parent=1 // pred_check
      _
    $region11: #{patch_embed.1} parent=1 // pred_check_branch
      %14 = sbr.rel (0) target = $region13
    $region12: #{patch_embed.1} parent=1 // pred_region
      _
    $region13: #{patch_embed.1} parent=1 // pred_fallthru
      _
    %v16 = vld [vmem:[%s0] sm:$0xf]
    %v17 = vld [vmem:[%s0 + $0x4] sm:$0xf]
    %v18 = vld [vmem:[%s0 + $0x8] sm:$0xf]
    %v19 = vld [vmem:[%s0 + $0xc] sm:$0xf]
    %v20 = vld [vmem:[%s1] sm:$0xf]
    %v21 = vld [vmem:[%s1 + $0x4] sm:$0xf]
    %v22 = vld [vmem:[%s1 + $0x8] sm:$0xf]
    %v23 = vld [vmem:[%s1 + $0xc] sm:$0xf]
    %v24 = vld [vmem:[%s1 + $0x10] sm:$0xf]
    %v25 = vld [vmem:[%s1 + $0x14] sm:$0xf]
    %v26 = vld [vmem:[%s1 + $0x18] sm:$0xf]
    %v27 = vld [vmem:[%s1 + $0x1c] sm:$0xf]
    %v28 = vld [vmem:[%s1 + $0x20] sm:$0xf]
    %v29 = vld [vmem:[%s1 + $0x24] sm:$0xf]
    %v30 = vld [vmem:[%s1 + $0x28] sm:$0xf]
    %v31 = vld [vmem:[%s1 + $0x2c] sm:$0xf]
    %v32 = vld [vmem:[%s1 + $0x30] sm:$0xf]
    %v33 = vld [vmem:[%s1 + $0x34] sm:$0xf]
    %v34 = vld [vmem:[%s1 + $0x38] sm:$0xf]
    %v35 = vld [vmem:[%s1 + $0x3c] sm:$0xf]
    %v36 = vld [vmem:[%s2] sm:$0x1]
    %v38 = vlaneseq
    %v39 = vshrl.u32 %v38, 7
    %v40 = vsub.s32 0, %v39
    %v41 = vrot.slane %v36, %v40
    %v47 = vunpack.c.l.b16 %v16
    %v48 = vunpack.c.l.b16 %v17
    %v49 = vunpack.c.l.b16 %v18
    %v50 = vunpack.c.l.b16 %v19
    %v51 = vpack.c.b16 %v48, %v47
    %v52 = vpack.c.b16 %v50, %v49
    %v71 = vunpack.c.l.b16 %v20
    %v72 = vunpack.c.l.b16 %v21
    %v73 = vunpack.c.l.b16 %v22
    %v74 = vunpack.c.l.b16 %v23
    %v75 = vunpack.c.l.b16 %v24
    %v76 = vunpack.c.l.b16 %v25
    %v77 = vunpack.c.l.b16 %v26
    %v78 = vunpack.c.l.b16 %v27
    %v79 = vunpack.c.l.b16 %v28
    %v80 = vunpack.c.l.b16 %v29
    %v81 = vunpack.c.l.b16 %v30
    %v82 = vunpack.c.l.b16 %v31
    %v83 = vunpack.c.l.b16 %v32
    %v84 = vunpack.c.l.b16 %v33
    %v85 = vunpack.c.l.b16 %v34
    %v86 = vunpack.c.l.b16 %v35
    %v87 = vpack.c.b16 %v72, %v71
    %v88 = vpack.c.b16 %v74, %v73
    %v89 = vpack.c.b16 %v76, %v75
    %v90 = vpack.c.b16 %v78, %v77
    %v91 = vpack.c.b16 %v80, %v79
    %v92 = vpack.c.b16 %v82, %v81
    %v93 = vpack.c.b16 %v84, %v83
    %v94 = vpack.c.b16 %v86, %v85
    %103 = vmatprep.subr.bf16.mxu0 0
    %104 = vmatpush1.bf16.msra.mxu0 %v87
    %105 = vmatprep.subr.bf16.mxu0 0
    %106 = vmatpush1.bf16.msra.mxu0 %v88
    %107 = vmatprep.subr.bf16.mxu0 0
    %108 = vmatpush1.bf16.msra.mxu0 %v89
    %109 = vmatprep.subr.bf16.mxu0 0
    %110 = vmatpush1.bf16.msra.mxu0 %v90
    %111 = vmatprep.subr.bf16.mxu0 0
    %112 = vmatpush1.bf16.msra.mxu0 %v91
    %113 = vmatprep.subr.bf16.mxu0 0
    %114 = vmatpush1.bf16.msra.mxu0 %v92
    %115 = vmatprep.subr.bf16.mxu0 0
    %116 = vmatpush1.bf16.msra.mxu0 %v93
    %117 = vmatprep.subr.bf16.mxu0 0
    %118 = vmatpush1.bf16.msra.mxu0 %v94
    %119 = vmatprep.subr.bf16.mxu0 0
    %120 = vmatpush1.bf16.msra.mxu0 0
    %121 = vmatprep.subr.bf16.mxu0 0
    %122 = vmatpush1.bf16.msra.mxu0 0
    %123 = vmatprep.subr.bf16.mxu0 0
    %124 = vmatpush1.bf16.msra.mxu0 0
    %125 = vmatprep.subr.bf16.mxu0 0
    %126 = vmatpush1.bf16.msra.mxu0 0
    %127 = vmatprep.subr.bf16.mxu0 0
    %128 = vmatpush1.bf16.msra.mxu0 0
    %129 = vmatprep.subr.bf16.mxu0 0
    %130 = vmatpush1.bf16.msra.mxu0 0
    %131 = vmatprep.subr.bf16.mxu0 0
    %132 = vmatpush1.bf16.msra.mxu0 0
    %133 = vmatprep.subr.bf16.mxu0 0
    %134 = vmatpush1.bf16.msra.mxu0 0
    %135 = vmatprep.mubr.bf16.mxu0 0
    %136 = vmatmul.mubr.bf16.gmra.mrb[0].mxu0 %v51
    %v137 = vpop.f32.mrb[0].mxu0
    %v138 = vadd.f32 %v41, %v137
    %v139 = vpop.f32.mrb[0].mxu0
    %v140 = vpop.f32.mrb[0].mxu0
    %v141 = vadd.f32 %v41, %v140
    %v142 = vpop.f32.mrb[0].mxu0
    %143 = vmatprep.mubr.bf16.mxu0 0
    %144 = vmatmul.mubr.bf16.gmra.mrb[0].mxu0 %v52
    %v145 = vpop.f32.mrb[0].mxu0
    %v146 = vadd.f32 %v41, %v145
    %v147 = vpop.f32.mrb[0].mxu0
    %v148 = vpop.f32.mrb[0].mxu0
    %v149 = vadd.f32 %v41, %v148
    %v150 = vpop.f32.mrb[0].mxu0
    %151 = vdwg.mxu0
    %152 = vst [vmem:[#allocation2] sm:$0xff] %v138
    %153 = vst [vmem:[#allocation2 + $0x8] sm:$0xff] %v141
    %154 = vst [vmem:[#allocation2 + $0x10] sm:$0xff] %v146
    %155 = vst [vmem:[#allocation2 + $0x18] sm:$0xff] %v149
    // Predicated region
    $region14: #{patch_embed.1} parent=1 // pred_check
      _
    $region15: #{patch_embed.1} parent=1 // pred_check_branch
      %157 = sbr.rel (0) target = $region17
    $region16: #{patch_embed.1} parent=1 // pred_region
      %s159 = ssub.s32 512, 512
      %160 = vsyncadd [#allocation3], %s159
      %s161 = sshll.u32 [#allocation2], 4
      %s162 = int_to_ptr.vmem [resolvable:$true] %s161
      %167 = dma.vmem_to_hbm [thread:$0]  %s162, 512, %s3, [#allocation3], 128, 128, 8
    $region17: #{patch_embed.1} parent=1 // pred_fallthru
      _
    // Predicated region
    $region18: #{patch_embed.1} parent=1 // pred_check
      _
    $region19: #{patch_embed.1} parent=1 // pred_check_branch
      %169 = sbr.rel (0) target = $region21
    $region20: #{patch_embed.1} parent=1 // pred_region
      %170 = dma.done [#allocation3], 512
    $region21: #{patch_embed.1} parent=1 // pred_fallthru
      _
    %171 = vsyncpa [#allocation3], 1

</llo_original>
